<compile_context>
chip_gen: v6e
topology: v6e:2x2x1
jax: 0.10.0
libtpu: 0.0.40
codegen_flags: <defaults>
</compile_context>

<pallas_src>
import jax
import jax.numpy as jnp
from jax.experimental import pallas as pl
from jax.experimental.pallas import tpu as pltpu

IN_F, HID_F, OUT_F = 2, 4, 1
LANE = 128                 # TPU lane width; batch tiles are multiples of this
DEFAULT_BLOCK_B = 2048     # batch lanes per grid step


def _xor_mlp_kernel(x_ref, w1_ref, b1_ref, w2_ref, b2_ref, o_ref):
    """One batch tile. x_ref: (2, TB) VMEM; w/b refs: SMEM scalars; o_ref: (1, TB)."""
    x = x_ref[...]                     # (2, TB)
    x0 = x[0:1, :]                     # (1, TB)
    x1 = x[1:2, :]                     # (1, TB)

    # 2 -> 4 -> 1 contraction as scalar-broadcast VPU multiply-adds
    # (weights are tiny; no MXU / padded 128x128 operands needed).
    z = jnp.full_like(x0, b2_ref[0])               # start from the output bias
    for j in range(HID_F):                         # statically unrolled (4 iters)
        h_j = x0 * w1_ref[0, j] + x1 * w1_ref[1, j] + b1_ref[j]   # Linear(2,4) col j
        h_j = jnp.maximum(h_j, 0.0)                               # ReLU
        z = z + h_j * w2_ref[j, 0]                                # Linear(4,1)

    # sigmoid(z) == 0.5 * tanh(z / 2) + 0.5  (EUP, no f32 divide)
    o_ref[...] = 0.5 * jnp.tanh(0.5 * z) + 0.5


def xor_model_forward(x, w1, b1, w2, b2, *, block_b=DEFAULT_BLOCK_B):
    """x: (B, 2) f32. w1: (2,4), b1: (4,), w2: (4,1), b2: (1,). Returns (B, 1)."""
    B = x.shape[0]

    # Pad the batch (lane axis) to a 128-aligned tile size; pick the tile so it
    # divides the padded batch exactly.
    bp128 = ((B + LANE - 1) // LANE) * LANE
    tb = min(max(block_b, LANE) // LANE * LANE, bp128)
    bp = ((bp128 + tb - 1) // tb) * tb
    grid = (bp // tb,)

    # Layout plumbing only: features -> sublanes, batch -> lanes. Weights are
    # NOT zero-padded; they go to SMEM at their true shapes.
    xt = jnp.zeros((IN_F, bp), jnp.float32).at[:, :B].set(x.astype(jnp.float32).T)

    smem = pl.BlockSpec(memory_space=pltpu.MemorySpace.SMEM)
    out = pl.pallas_call(
        _xor_mlp_kernel,
        out_shape=jax.ShapeDtypeStruct((1, bp), jnp.float32),
        grid=grid,
        in_specs=[
            pl.BlockSpec((IN_F, tb), lambda i: (0, i)),   # x tile (VMEM, pipelined)
            smem, smem, smem, smem,                       # w1, b1, w2, b2 (resident)
        ],
        out_specs=pl.BlockSpec((1, tb), lambda i: (0, i)),  # lane-dense output tile
        compiler_params=pltpu.CompilerParams(
            dimension_semantics=("parallel",),  # shard batch across TCs on v7x
        ),
    )(
        xt,
        w1.astype(jnp.float32),
        b1.astype(jnp.float32),
        w2.astype(jnp.float32),
        b2.astype(jnp.float32),
    )

    return out[0, :B].reshape(B, OUT_F)


def _reference(x, w1, b1, w2, b2):
    h = jnp.maximum(x @ w1 + b1, 0.0)
    return jax.nn.sigmoid(h @ w2 + b2)


if __name__ == "__main__":
    key = jax.random.PRNGKey(0)
    k_x, k_w1, k_b1, k_w2, k_b2 = jax.random.split(key, 5)

    # Deterministic parameter init (PyTorch Linear-style uniform bounds).
    bound1 = 1.0 / (IN_F ** 0.5)
    bound2 = 1.0 / (HID_F ** 0.5)
    w1 = jax.random.uniform(k_w1, (IN_F, HID_F), jnp.float32, -bound1, bound1)
    b1 = jax.random.uniform(k_b1, (HID_F,), jnp.float32, -bound1, bound1)
    w2 = jax.random.uniform(k_w2, (HID_F, OUT_F), jnp.float32, -bound2, bound2)
    b2 = jax.random.uniform(k_b2, (OUT_F,), jnp.float32, -bound2, bound2)

    # Small batch of 2-feature inputs (XOR-like domain in [0,1]^2).
    B = 8
    x = jax.random.uniform(k_x, (B, IN_F), jnp.float32)

    y = xor_model_forward(x, w1, b1, w2, b2)
    jax.block_until_ready(y)
    y_ref = _reference(x, w1, b1, w2, b2)
    assert y.shape == (B, OUT_F)
    assert jnp.allclose(y, y_ref, atol=1e-5, rtol=1e-5)

    # Also exercise a multi-step batch-tiled grid (small block -> grid=(3,)).
    B2 = 300
    x2 = jax.random.uniform(k_x, (B2, IN_F), jnp.float32)
    y2 = xor_model_forward(x2, w1, b1, w2, b2, block_b=128)
    jax.block_until_ready(y2)
    assert y2.shape == (B2, OUT_F)
    assert jnp.allclose(y2, _reference(x2, w1, b1, w2, b2), atol=1e-5, rtol=1e-5)

    print("KERNEL_OK")
</pallas_src>

<mosaic_0001>
module attributes {stable_mosaic.version = 11 : i64} {
  func.func @_xor_mlp_kernel(%arg0: i32, %arg1: memref<2x128xf32, #tpu.memory_space<vmem>>, %arg2: memref<2x4xf32, #tpu.memory_space<smem>>, %arg3: memref<4xf32, #tpu.memory_space<smem>>, %arg4: memref<4x1xf32, #tpu.memory_space<smem>>, %arg5: memref<1xf32, #tpu.memory_space<smem>>, %arg6: memref<1x128xf32, #tpu.memory_space<vmem>>) attributes {dimension_semantics = [#tpu.dimension_semantics<parallel>], iteration_bounds = array<i64: 1>, scalar_prefetch = 0 : i64, scratch_operands = 0 : i64, tpu.core_type = #tpu.core_type<tc>, window_params = [{transform_indices = @transform_0, window_bounds = array<i64: 2, 128>}, {transform_indices = @transform_1, window_bounds = array<i64: 2, 4>}, {transform_indices = @transform_2, window_bounds = array<i64: 4>}, {transform_indices = @transform_3, window_bounds = array<i64: 4, 1>}, {transform_indices = @transform_4, window_bounds = array<i64: 1>}, {transform_indices = @transform_5, window_bounds = array<i64: 1, 128>}]} {
    %c0 = arith.constant 0 : index
    %c0_0 = arith.constant 0 : index
    %0 = vector.load %arg1[%c0, %c0_0] : memref<2x128xf32, #tpu.memory_space<vmem>>, vector<2x128xf32>
    %1 = vector.extract_strided_slice %0 {offsets = [0, 0], sizes = [1, 128], strides = [1, 1]} : vector<2x128xf32> to vector<1x128xf32>
    %2 = vector.extract_strided_slice %0 {offsets = [1, 0], sizes = [1, 128], strides = [1, 1]} : vector<2x128xf32> to vector<1x128xf32>
    %c0_1 = arith.constant 0 : index
    %3 = memref.load %arg5[%c0_1] : memref<1xf32, #tpu.memory_space<smem>>
    %4 = vector.broadcast %3 : f32 to vector<1x128xf32>
    %c0_2 = arith.constant 0 : index
    %c0_3 = arith.constant 0 : index
    %5 = memref.load %arg2[%c0_2, %c0_3] : memref<2x4xf32, #tpu.memory_space<smem>>
    %6 = vector.broadcast %5 : f32 to vector<1x128xf32>
    %7 = arith.mulf %1, %6 : vector<1x128xf32>
    %c1 = arith.constant 1 : index
    %c0_4 = arith.constant 0 : index
    %8 = memref.load %arg2[%c1, %c0_4] : memref<2x4xf32, #tpu.memory_space<smem>>
    %9 = vector.broadcast %8 : f32 to vector<1x128xf32>
    %10 = arith.mulf %2, %9 : vector<1x128xf32>
    %11 = arith.addf %7, %10 : vector<1x128xf32>
    %c0_5 = arith.constant 0 : index
    %12 = memref.load %arg3[%c0_5] : memref<4xf32, #tpu.memory_space<smem>>
    %13 = vector.broadcast %12 : f32 to vector<1x128xf32>
    %14 = arith.addf %11, %13 : vector<1x128xf32>
    %cst = arith.constant 0.000000e+00 : f32
    %15 = vector.broadcast %cst : f32 to vector<1x128xf32>
    %16 = arith.maximumf %14, %15 : vector<1x128xf32>
    %c0_6 = arith.constant 0 : index
    %c0_7 = arith.constant 0 : index
    %17 = memref.load %arg4[%c0_6, %c0_7] : memref<4x1xf32, #tpu.memory_space<smem>>
    %18 = vector.broadcast %17 : f32 to vector<1x128xf32>
    %19 = arith.mulf %16, %18 : vector<1x128xf32>
    %20 = arith.addf %4, %19 : vector<1x128xf32>
    %c0_8 = arith.constant 0 : index
    %c1_9 = arith.constant 1 : index
    %21 = memref.load %arg2[%c0_8, %c1_9] : memref<2x4xf32, #tpu.memory_space<smem>>
    %22 = vector.broadcast %21 : f32 to vector<1x128xf32>
    %23 = arith.mulf %1, %22 : vector<1x128xf32>
    %c1_10 = arith.constant 1 : index
    %c1_11 = arith.constant 1 : index
    %24 = memref.load %arg2[%c1_10, %c1_11] : memref<2x4xf32, #tpu.memory_space<smem>>
    %25 = vector.broadcast %24 : f32 to vector<1x128xf32>
    %26 = arith.mulf %2, %25 : vector<1x128xf32>
    %27 = arith.addf %23, %26 : vector<1x128xf32>
    %c1_12 = arith.constant 1 : index
    %28 = memref.load %arg3[%c1_12] : memref<4xf32, #tpu.memory_space<smem>>
    %29 = vector.broadcast %28 : f32 to vector<1x128xf32>
    %30 = arith.addf %27, %29 : vector<1x128xf32>
    %cst_13 = arith.constant 0.000000e+00 : f32
    %31 = vector.broadcast %cst_13 : f32 to vector<1x128xf32>
    %32 = arith.maximumf %30, %31 : vector<1x128xf32>
    %c1_14 = arith.constant 1 : index
    %c0_15 = arith.constant 0 : index
    %33 = memref.load %arg4[%c1_14, %c0_15] : memref<4x1xf32, #tpu.memory_space<smem>>
    %34 = vector.broadcast %33 : f32 to vector<1x128xf32>
    %35 = arith.mulf %32, %34 : vector<1x128xf32>
    %36 = arith.addf %20, %35 : vector<1x128xf32>
    %c0_16 = arith.constant 0 : index
    %c2 = arith.constant 2 : index
    %37 = memref.load %arg2[%c0_16, %c2] : memref<2x4xf32, #tpu.memory_space<smem>>
    %38 = vector.broadcast %37 : f32 to vector<1x128xf32>
    %39 = arith.mulf %1, %38 : vector<1x128xf32>
    %c1_17 = arith.constant 1 : index
    %c2_18 = arith.constant 2 : index
    %40 = memref.load %arg2[%c1_17, %c2_18] : memref<2x4xf32, #tpu.memory_space<smem>>
    %41 = vector.broadcast %40 : f32 to vector<1x128xf32>
    %42 = arith.mulf %2, %41 : vector<1x128xf32>
    %43 = arith.addf %39, %42 : vector<1x128xf32>
    %c2_19 = arith.constant 2 : index
    %44 = memref.load %arg3[%c2_19] : memref<4xf32, #tpu.memory_space<smem>>
    %45 = vector.broadcast %44 : f32 to vector<1x128xf32>
    %46 = arith.addf %43, %45 : vector<1x128xf32>
    %cst_20 = arith.constant 0.000000e+00 : f32
    %47 = vector.broadcast %cst_20 : f32 to vector<1x128xf32>
    %48 = arith.maximumf %46, %47 : vector<1x128xf32>
    %c2_21 = arith.constant 2 : index
    %c0_22 = arith.constant 0 : index
    %49 = memref.load %arg4[%c2_21, %c0_22] : memref<4x1xf32, #tpu.memory_space<smem>>
    %50 = vector.broadcast %49 : f32 to vector<1x128xf32>
    %51 = arith.mulf %48, %50 : vector<1x128xf32>
    %52 = arith.addf %36, %51 : vector<1x128xf32>
    %c0_23 = arith.constant 0 : index
    %c3 = arith.constant 3 : index
    %53 = memref.load %arg2[%c0_23, %c3] : memref<2x4xf32, #tpu.memory_space<smem>>
    %54 = vector.broadcast %53 : f32 to vector<1x128xf32>
    %55 = arith.mulf %1, %54 : vector<1x128xf32>
    %c1_24 = arith.constant 1 : index
    %c3_25 = arith.constant 3 : index
    %56 = memref.load %arg2[%c1_24, %c3_25] : memref<2x4xf32, #tpu.memory_space<smem>>
    %57 = vector.broadcast %56 : f32 to vector<1x128xf32>
    %58 = arith.mulf %2, %57 : vector<1x128xf32>
    %59 = arith.addf %55, %58 : vector<1x128xf32>
    %c3_26 = arith.constant 3 : index
    %60 = memref.load %arg3[%c3_26] : memref<4xf32, #tpu.memory_space<smem>>
    %61 = vector.broadcast %60 : f32 to vector<1x128xf32>
    %62 = arith.addf %59, %61 : vector<1x128xf32>
    %cst_27 = arith.constant 0.000000e+00 : f32
    %63 = vector.broadcast %cst_27 : f32 to vector<1x128xf32>
    %64 = arith.maximumf %62, %63 : vector<1x128xf32>
    %c3_28 = arith.constant 3 : index
    %c0_29 = arith.constant 0 : index
    %65 = memref.load %arg4[%c3_28, %c0_29] : memref<4x1xf32, #tpu.memory_space<smem>>
    %66 = vector.broadcast %65 : f32 to vector<1x128xf32>
    %67 = arith.mulf %64, %66 : vector<1x128xf32>
    %68 = arith.addf %52, %67 : vector<1x128xf32>
    %cst_30 = arith.constant 5.000000e-01 : f32
    %69 = vector.broadcast %cst_30 : f32 to vector<1x128xf32>
    %70 = arith.mulf %69, %68 : vector<1x128xf32>
    %71 = math.tanh %70 : vector<1x128xf32>
    %cst_31 = arith.constant 5.000000e-01 : f32
    %72 = vector.broadcast %cst_31 : f32 to vector<1x128xf32>
    %73 = arith.mulf %72, %71 : vector<1x128xf32>
    %cst_32 = arith.constant 5.000000e-01 : f32
    %74 = vector.broadcast %cst_32 : f32 to vector<1x128xf32>
    %75 = arith.addf %73, %74 : vector<1x128xf32>
    %c0_33 = arith.constant 0 : index
    %c0_34 = arith.constant 0 : index
    %76 = vector.load %arg6[%c0_33, %c0_34] : memref<1x128xf32, #tpu.memory_space<vmem>>, vector<1x128xf32>
    tpu.vector_store %arg6[%c0_33, %c0_34], %75 {strides = array<i32>} : memref<1x128xf32, #tpu.memory_space<vmem>>, vector<1x128xf32>,
    return
  }
  func.func @transform_0(%arg0: i32) -> (i32, i32) {
    %c0_i32 = arith.constant 0 : i32
    %c0_i32_0 = arith.constant 0 : i32
    return %c0_i32, %arg0 : i32, i32
  }
  func.func @transform_1(%arg0: i32) -> (i32, i32) {
    %c0_i32 = arith.constant 0 : i32
    %c0_i32_0 = arith.constant 0 : i32
    %c0_i32_1 = arith.constant 0 : i32
    return %c0_i32, %c0_i32_0 : i32, i32
  }
  func.func @transform_2(%arg0: i32) -> i32 {
    %c0_i32 = arith.constant 0 : i32
    %c0_i32_0 = arith.constant 0 : i32
    return %c0_i32 : i32
  }
  func.func @transform_3(%arg0: i32) -> (i32, i32) {
    %c0_i32 = arith.constant 0 : i32
    %c0_i32_0 = arith.constant 0 : i32
    %c0_i32_1 = arith.constant 0 : i32
    return %c0_i32, %c0_i32_0 : i32, i32
  }
  func.func @transform_4(%arg0: i32) -> i32 {
    %c0_i32 = arith.constant 0 : i32
    %c0_i32_0 = arith.constant 0 : i32
    return %c0_i32 : i32
  }
  func.func @transform_5(%arg0: i32) -> (i32, i32) {
    %c0_i32 = arith.constant 0 : i32
    %c0_i32_0 = arith.constant 0 : i32
    return %c0_i32, %arg0 : i32, i32
  }
}

</mosaic_0001>

<llo_original>
// kernel: tpu_custom_call.1
$region0: #{tpu_custom_call.1}
  #allocation0 [shape = 'u32[]', space=smem, size = 0x4, offset = 0x4, fixed_abs, tag = 'smem constant byte address 0x4 - core index']
  #allocation1 [shape = 'u32[144,128]{1,0:T(1,128)}', space=vmem, size = 0x12000, scoped, tag = 'internal scratch']
  #allocation2 [shape = 'f32[1]{0:T(128)S(6)}', space=smem, size = 0x200, scoped, tag = 'scoped memory for tpu_custom_call.1']
  %s0 = inlined_call_operand.vmem [shape: f32[2,128], index: 0, kind: input, shape index: {}]
  %s1 = inlined_call_operand.vmem [shape: f32[2,4], index: 1, kind: input, shape index: {}]
  %s2 = inlined_call_operand.vmem [shape: f32[4], index: 2, kind: input, shape index: {}]
  %s3 = inlined_call_operand.vmem [shape: f32[4,1], index: 3, kind: input, shape index: {}]
  %s4 = inlined_call_operand.<no memory space> [shape: f32[1], index: 4, kind: input, shape index: {}]
  %s5 = inlined_call_operand.hbm [shape: f32[1,128], index: 5, kind: output, shape index: {}]
  %s6 = sld [smem:[#allocation0]]
  $region42: #{tpu_custom_call.1} parent=0
    _
  %s8 = ssub.s32 1, %s6
  %s9 = scalar_select 0, %s8, %s6
  %10 = sst [smem:[#allocation2]] %s4
  $region1: #{tpu_custom_call.1} parent=0
    #allocation3 [shape = 'u8[1024]{0}', space=smem, size = 0x400, scoped, tag = 'input window, operand 1, single buffered']
    #allocation4 [shape = 's32[1]{0}', space=sflag, size = 0x4, scoped, tag = 'scoped memory for tpu_custom_call.1']
    #allocation5 [shape = 's32[1]{0}', space=sflag, size = 0x4, scoped, tag = 'scoped memory for tpu_custom_call.1']
    #allocation6 [shape = 'u8[512]{0}', space=smem, size = 0x200, scoped, tag = 'input window, operand 2, single buffered']
    #allocation7 [shape = 's32[1]{0}', space=sflag, size = 0x4, scoped, tag = 'scoped memory for tpu_custom_call.1']
    #allocation8 [shape = 'u8[2048]{0}', space=smem, size = 0x800, scoped, tag = 'input window, operand 3, single buffered']
    #allocation9 [shape = 'u8[512]{0}', space=vmem, size = 0x400, scoped, tag = 'output window, operand 0, single buffered']
    %11 = vsyncpa [#allocation5], 0
    %12 = vsyncpa [#allocation7], 0
    %13 = vsyncpa [#allocation4], 0
    // Predicated region
    $region2: #{tpu_custom_call.1} parent=1 // pred_check
      _
    $region3: #{tpu_custom_call.1} parent=1 // pred_check_branch
      %15 = sbr.rel (0) target = $region5
    $region4: #{tpu_custom_call.1} parent=1 // pred_region
      _
    $region5: #{tpu_custom_call.1} parent=1 // pred_fallthru
      _
    // Predicated region
    $region6: #{tpu_custom_call.1} parent=1 // pred_check
      _
    $region7: #{tpu_custom_call.1} parent=1 // pred_check_branch
      %17 = sbr.rel (0) target = $region9
    $region8: #{tpu_custom_call.1} parent=1 // pred_region
      %s19 = ssub.s32 32, 32
      %20 = vsyncadd [#allocation5], %s19
      %s22 = sshll.u32 %s1, 4
      %s23 = int_to_ptr.vmem [resolvable:$true] %s22
      %25 = dma.vmem_to_smem %s23, 32, [#allocation3], [#allocation5]
    $region9: #{tpu_custom_call.1} parent=1 // pred_fallthru
      _
    // Predicated region
    $region10: #{tpu_custom_call.1} parent=1 // pred_check
      _
    $region11: #{tpu_custom_call.1} parent=1 // pred_check_branch
      %27 = sbr.rel (0) target = $region13
    $region12: #{tpu_custom_call.1} parent=1 // pred_region
      %s29 = ssub.s32 16, 16
      %30 = vsyncadd [#allocation7], %s29
      %s32 = sshll.u32 %s2, 4
      %s33 = int_to_ptr.vmem [resolvable:$true] %s32
      %35 = dma.vmem_to_smem %s33, 16, [#allocation6], [#allocation7]
    $region13: #{tpu_custom_call.1} parent=1 // pred_fallthru
      _
    // Predicated region
    $region14: #{tpu_custom_call.1} parent=1 // pred_check
      _
    $region15: #{tpu_custom_call.1} parent=1 // pred_check_branch
      %37 = sbr.rel (0) target = $region17
    $region16: #{tpu_custom_call.1} parent=1 // pred_region
      %s39 = ssub.s32 64, 64
      %40 = vsyncadd [#allocation7], %s39
      %s42 = sshll.u32 %s3, 4
      %s43 = int_to_ptr.vmem [resolvable:$true] %s42
      %45 = dma.vmem_to_smem %s43, 64, [#allocation8], [#allocation7]
    $region17: #{tpu_custom_call.1} parent=1 // pred_fallthru
      _
    // Predicated region
    $region18: #{tpu_custom_call.1} parent=1 // pred_check
      _
    $region19: #{tpu_custom_call.1} parent=1 // pred_check_branch
      %47 = sbr.rel (0) target = $region21
    $region20: #{tpu_custom_call.1} parent=1 // pred_region
      _
    $region21: #{tpu_custom_call.1} parent=1 // pred_fallthru
      _
    // Predicated region
    $region22: #{tpu_custom_call.1} parent=1 // pred_check
      _
    $region23: #{tpu_custom_call.1} parent=1 // pred_check_branch
      %49 = sbr.rel (0) target = $region25
    $region24: #{tpu_custom_call.1} parent=1 // pred_region
      %50 = dma.done [#allocation5], 32
    $region25: #{tpu_custom_call.1} parent=1 // pred_fallthru
      _
    // Predicated region
    $region26: #{tpu_custom_call.1} parent=1 // pred_check
      _
    $region27: #{tpu_custom_call.1} parent=1 // pred_check_branch
      %52 = sbr.rel (0) target = $region29
    $region28: #{tpu_custom_call.1} parent=1 // pred_region
      %53 = dma.done [#allocation7], 16
    $region29: #{tpu_custom_call.1} parent=1 // pred_fallthru
      _
    // Predicated region
    $region30: #{tpu_custom_call.1} parent=1 // pred_check
      _
    $region31: #{tpu_custom_call.1} parent=1 // pred_check_branch
      %55 = sbr.rel (0) target = $region33
    $region32: #{tpu_custom_call.1} parent=1 // pred_region
      %56 = dma.done [#allocation7], 64
    $region33: #{tpu_custom_call.1} parent=1 // pred_fallthru
      _
    %57 = sfence
    %v58 = vld [vmem:[%s0] sm:$0x3]
    %s59 = sld [smem:[#allocation2]]
    %v60 = vstv %s59
    %s61 = sld [smem:[#allocation3]]
    %v62 = vstv %s61
    %v63 = vmul.f32 %v58, %v62
    %s64 = sld [smem:[#allocation3 + $0x80]]
    %v65 = vstv %s64
    %v66 = vmul.f32 %v58, %v65
    %v68 = vrot.slane %v66, 1
    %v70 = vadd.f32 %v63, %v68
    %s71 = sld [smem:[#allocation6]]
    %v72 = vstv %s71
    %v73 = vadd.f32 %v70, %v72
    %v74 = vmax.f32 %v73, 0.0
    %s75 = sld [smem:[#allocation8]]
    %v76 = vstv %s75
    %v77 = vmul.f32 %v74, %v76
    %v78 = vadd.f32 %v60, %v77
    %s79 = sld [smem:[#allocation3 + $0x1]]
    %v80 = vstv %s79
    %v81 = vmul.f32 %v58, %v80
    %s82 = sld [smem:[#allocation3 + $0x81]]
    %v83 = vstv %s82
    %v84 = vmul.f32 %v58, %v83
    %v86 = vrot.slane %v84, 1
    %v88 = vadd.f32 %v81, %v86
    %s89 = sld [smem:[#allocation6 + $0x1]]
    %v90 = vstv %s89
    %v91 = vadd.f32 %v88, %v90
    %v92 = vmax.f32 %v91, 0.0
    %s93 = sld [smem:[#allocation8 + $0x80]]
    %v94 = vstv %s93
    %v95 = vmul.f32 %v92, %v94
    %v96 = vadd.f32 %v78, %v95
    %s97 = sld [smem:[#allocation3 + $0x2]]
    %v98 = vstv %s97
    %v99 = vmul.f32 %v58, %v98
    %s100 = sld [smem:[#allocation3 + $0x82]]
    %v101 = vstv %s100
    %v102 = vmul.f32 %v58, %v101
    %v104 = vrot.slane %v102, 1
    %v106 = vadd.f32 %v99, %v104
    %s107 = sld [smem:[#allocation6 + $0x2]]
    %v108 = vstv %s107
    %v109 = vadd.f32 %v106, %v108
    %v110 = vmax.f32 %v109, 0.0
    %s111 = sld [smem:[#allocation8 + $0x100]]
    %v112 = vstv %s111
    %v113 = vmul.f32 %v110, %v112
    %v114 = vadd.f32 %v96, %v113
    %s115 = sld [smem:[#allocation3 + $0x3]]
    %v116 = vstv %s115
    %v117 = vmul.f32 %v58, %v116
    %s118 = sld [smem:[#allocation3 + $0x83]]
    %v119 = vstv %s118
    %v120 = vmul.f32 %v58, %v119
    %v122 = vrot.slane %v120, 1
    %v124 = vadd.f32 %v117, %v122
    %s125 = sld [smem:[#allocation6 + $0x3]]
    %v126 = vstv %s125
    %v127 = vadd.f32 %v124, %v126
    %v128 = vmax.f32 %v127, 0.0
    %s129 = sld [smem:[#allocation8 + $0x180]]
    %v130 = vstv %s129
    %v131 = vmul.f32 %v128, %v130
    %v132 = vadd.f32 %v114, %v131
    %v133 = vmul.f32 %v132, 0.5
    %v134 = vtanh.pop %v133
    %v135 = vmul.f32 %v134, 0.5
    %v136 = vadd.f32 %v135, 0.5
    %137 = vst [vmem:[#allocation9] sm:$0x1] %v136
    // Predicated region
    $region34: #{tpu_custom_call.1} parent=1 // pred_check
      _
    $region35: #{tpu_custom_call.1} parent=1 // pred_check_branch
      %139 = sbr.rel (0) target = $region37
    $region36: #{tpu_custom_call.1} parent=1 // pred_region
      %s141 = ssub.s32 16, 16
      %142 = vsyncadd [#allocation4], %s141
      %s144 = sshll.u32 [#allocation9], 4
      %s145 = int_to_ptr.vmem [resolvable:$true] %s144
      %147 = dma.vmem_to_hbm [thread:$0]  %s145, 16, %s5, [#allocation4]
    $region37: #{tpu_custom_call.1} parent=1 // pred_fallthru
      _
    // Predicated region
    $region38: #{tpu_custom_call.1} parent=1 // pred_check
      _
    $region39: #{tpu_custom_call.1} parent=1 // pred_check_branch
      %149 = sbr.rel (0) target = $region41
    $region40: #{tpu_custom_call.1} parent=1 // pred_region
      %150 = dma.done [#allocation4], 16
    $region41: #{tpu_custom_call.1} parent=1 // pred_fallthru
      _
    %151 = vsyncpa [#allocation4], 1
    %152 = vsyncpa [#allocation5], 1
    %153 = vsyncpa [#allocation7], 1

</llo_original>
